<compile_context>
chip_gen: v7x
topology: tpu7x:2x2x1
jax: 0.10.0
libtpu: 0.0.40
codegen_flags: <defaults>
</compile_context>

<pallas_src>
import functools

import jax
import jax.numpy as jnp
from jax import lax
from jax.experimental import pallas as pl
from jax.experimental.pallas import tpu as pltpu


# ------------------------------ tile pickers --------------------------------

def _pick_lane_tile(hw):
    # >=512 lanes amortize the ~0.35us per-step overhead; must be a multiple
    # of 128 (or the full extent) to keep stores unmasked.
    for t in (1024, 512, 256, 128):
        if hw % t == 0:
            return t
    return hw


def _pick_row_tile(nc):
    for t in (256, 128, 64, 32, 16, 8):
        if nc % t == 0:
            return t
    return nc


def _tile_per_channel(vec_c, n, c):
    """(C,) -> (N*C, 1) f32 column; row j holds channel j % C.  Tiny XLA op."""
    return jnp.tile(vec_c.astype(jnp.float32).reshape(1, c), (n, 1)).reshape(n * c, 1)


# ------------------------------ Pallas kernels -------------------------------

def _bn_train_fused_kernel(x_ref, gamma_ref, beta_ref, rm_ref, rv_ref,
                           y_ref, nrm_ref, nrv_ref, *, n, c, eps, momentum):
    """Fully fused training BatchNorm2d on a dense (N*C, HW) slab.

    x:       (NC, HW)  activations (any float dtype), row j = (batch j//C, chan j%C)
    gamma:   (NC, 1)   weight, pre-tiled per row
    beta:    (NC, 1)   bias, pre-tiled per row
    rm/rv:   (NC, 1)   running mean/var, pre-tiled per row
    y:       (NC, HW)  output in the input dtype
    nrm/nrv: (NC, 1)   updated running stats (rows j and j+C identical; wrapper keeps [0:C))
    """
    x = x_ref[...].astype(jnp.float32)                  # (NC, HW)
    hw = x.shape[1]
    count = n * hw
    inv_count = 1.0 / float(count)

    # One-pass stats: sum and sum-of-squares in the same sweep (independent
    # lane reductions -> both XLU units can be busy).
    row_sum = jnp.sum(x, axis=1, keepdims=True)         # (NC, 1)
    row_sumsq = jnp.sum(x * x, axis=1, keepdims=True)   # (NC, 1)

    # Batch fold: rows j, j+C, j+2C, ... share a channel, so summing sublane
    # rotations by multiples of C leaves *every* row holding its channel total
    # -> per-channel stats already broadcast to (NC,1); no slices, no masks.
    sum_full, sumsq_full = row_sum, row_sumsq
    for i in range(1, n):                               # static unroll, tiny
        sum_full = sum_full + pltpu.roll(row_sum, shift=i * c, axis=0)
        sumsq_full = sumsq_full + pltpu.roll(row_sumsq, shift=i * c, axis=0)

    mean = sum_full * inv_count                         # (NC, 1)
    var = jnp.maximum(sumsq_full * inv_count - mean * mean, 0.0)   # biased, clamped

    # Normalization folded into a per-row affine (no `centered` temporary).
    inv_std = lax.rsqrt(var + eps)                      # EUP slot
    scale = gamma_ref[...] * inv_std                    # (NC, 1)
    shift = beta_ref[...] - mean * scale                # (NC, 1)
    y_ref[...] = (x * scale + shift).astype(y_ref.dtype)   # one dense store

    # Fused running-stat EMA (PyTorch uses the unbiased variance here).
    unbiased = var * (float(count) / float(max(count - 1, 1)))
    nrm_ref[...] = (1.0 - momentum) * rm_ref[...] + momentum * mean
    nrv_ref[...] = (1.0 - momentum) * rv_ref[...] + momentum * unbiased


def _bn_stats_kernel(x_ref, sum_ref, sumsq_ref):
    """Tiled per-row sum / sum-of-squares accumulation (reduction axis last)."""
    @pl.when(pl.program_id(1) == 0)
    def _():
        sum_ref[...] = jnp.zeros_like(sum_ref)
        sumsq_ref[...] = jnp.zeros_like(sumsq_ref)
    x = x_ref[...].astype(jnp.float32)                  # (row_tile, lane_tile)
    sum_ref[...] += jnp.sum(x, axis=1, keepdims=True)
    sumsq_ref[...] += jnp.sum(x * x, axis=1, keepdims=True)


def _bn_affine_kernel(x_ref, scale_ref, shift_ref, y_ref):
    """Per-row affine: y = x*scale + shift (normalize pass / eval mode)."""
    x = x_ref[...].astype(jnp.float32)
    y_ref[...] = (x * scale_ref[...] + shift_ref[...]).astype(y_ref.dtype)


# ------------------------------ Pallas wrappers ------------------------------

def _bn_train_fused_pallas(x2, gamma_col, beta_col, rm_col, rv_col,
                           n, c, eps, momentum):
    nc, hw = x2.shape
    kernel = functools.partial(_bn_train_fused_kernel, n=n, c=c,
                               eps=float(eps), momentum=float(momentum))

    def full(shape):
        return pl.BlockSpec(shape, lambda i: (0,) * len(shape))

    return pl.pallas_call(
        kernel,
        out_shape=(jax.ShapeDtypeStruct((nc, hw), x2.dtype),
                   jax.ShapeDtypeStruct((nc, 1), jnp.float32),
                   jax.ShapeDtypeStruct((nc, 1), jnp.float32)),
        grid=(1,),
        in_specs=[full((nc, hw)), full((nc, 1)), full((nc, 1)),
                  full((nc, 1)), full((nc, 1))],
        out_specs=(full((nc, hw)), full((nc, 1)), full((nc, 1))),
        compiler_params=pltpu.CompilerParams(
            dimension_semantics=("arbitrary",),
            vmem_limit_bytes=32 * 1024 * 1024),   # above the 16 MiB v5e default
    )(x2, gamma_col, beta_col, rm_col, rv_col)


def _bn_row_stats_pallas(x2):
    nc, hw = x2.shape
    rt, lt = _pick_row_tile(nc), _pick_lane_tile(hw)
    return pl.pallas_call(
        _bn_stats_kernel,
        out_shape=(jax.ShapeDtypeStruct((nc, 1), jnp.float32),
                   jax.ShapeDtypeStruct((nc, 1), jnp.float32)),
        grid=(nc // rt, hw // lt),                       # reduction axis last
        in_specs=[pl.BlockSpec((rt, lt), lambda r, t: (r, t))],
        out_specs=(pl.BlockSpec((rt, 1), lambda r, t: (r, 0)),
                   pl.BlockSpec((rt, 1), lambda r, t: (r, 0))),
        compiler_params=pltpu.CompilerParams(
            dimension_semantics=("parallel", "arbitrary")),
    )(x2)


def _bn_affine_pallas(x2, scale_col, shift_col, out_dtype):
    nc, hw = x2.shape
    rt, lt = _pick_row_tile(nc), _pick_lane_tile(hw)
    return pl.pallas_call(
        _bn_affine_kernel,
        out_shape=jax.ShapeDtypeStruct((nc, hw), out_dtype),
        grid=(nc // rt, hw // lt),
        in_specs=[pl.BlockSpec((rt, lt), lambda r, t: (r, t)),
                  pl.BlockSpec((rt, 1), lambda r, t: (r, 0)),
                  pl.BlockSpec((rt, 1), lambda r, t: (r, 0))],
        out_specs=pl.BlockSpec((rt, lt), lambda r, t: (r, t)),
        compiler_params=pltpu.CompilerParams(
            dimension_semantics=("parallel", "parallel")),  # megacore-friendly
    )(x2, scale_col, shift_col)


# ---------------------------- forward (module spec) ---------------------------

# f32 bytes of x below which the single fused block is used (keeps the fused
# call, with double-buffering, well under v7x's 64 MiB physical VMEM).
_FUSED_X_BYTES_LIMIT = 4 * 1024 * 1024


def meta_batch_norm2d(x_nchw, weight, bias, running_mean, running_var, *,
                      training=True, momentum=0.1, eps=1e-5, force_tiled=False):
    """Functional equivalent of MetaBatchNorm2d.forward (F.batch_norm).

    Returns (y, new_running_mean, new_running_var).  PyTorch mutates the
    running buffers in place; here they are returned as fresh arrays.
    """
    N, C, H, W = x_nchw.shape
    HW, NC = H * W, N * C
    x2 = x_nchw.reshape(NC, HW)                # contiguous reshape, no copy
    out_dtype = x_nchw.dtype

    if training:
        count = N * HW
        use_fused = (not force_tiled) and (NC * HW * 4 <= _FUSED_X_BYTES_LIMIT)
        if use_fused:
            y2, nrm_full, nrv_full = _bn_train_fused_pallas(
                x2,
                _tile_per_channel(weight, N, C),
                _tile_per_channel(bias, N, C),
                _tile_per_channel(running_mean, N, C),
                _tile_per_channel(running_var, N, C),
                N, C, eps, momentum)
            new_rm = nrm_full[:C, 0].astype(running_mean.dtype)
            new_rv = nrv_full[:C, 0].astype(running_var.dtype)
        else:
            # Large activations: tiled two-pass (stats accumulate, then affine).
            row_sum, row_sumsq = _bn_row_stats_pallas(x2)
            ch_sum = row_sum.reshape(N, C).sum(axis=0)        # tiny C-length math
            ch_sumsq = row_sumsq.reshape(N, C).sum(axis=0)
            mean = ch_sum / count
            var = jnp.maximum(ch_sumsq / count - mean * mean, 0.0)
            scale = weight.astype(jnp.float32) * lax.rsqrt(var + eps)
            shift = bias.astype(jnp.float32) - mean * scale
            y2 = _bn_affine_pallas(x2,
                                   _tile_per_channel(scale, N, C),
                                   _tile_per_channel(shift, N, C),
                                   out_dtype)
            unbiased = var * (count / max(count - 1, 1))
            new_rm = ((1.0 - momentum) * running_mean + momentum * mean
                      ).astype(running_mean.dtype)
            new_rv = ((1.0 - momentum) * running_var + momentum * unbiased
                      ).astype(running_var.dtype)
        return y2.reshape(N, C, H, W), new_rm, new_rv
    else:
        # Eval mode: per-channel scale/shift (tiny), tiled affine kernel.
        scale = weight.astype(jnp.float32) * lax.rsqrt(
            running_var.astype(jnp.float32) + eps)
        shift = bias.astype(jnp.float32) - running_mean.astype(jnp.float32) * scale
        y2 = _bn_affine_pallas(x2,
                               _tile_per_channel(scale, N, C),
                               _tile_per_channel(shift, N, C),
                               out_dtype)
        return y2.reshape(N, C, H, W), running_mean, running_var


if __name__ == "__main__":
    key = jax.random.PRNGKey(0)
    kx, kw, kb = jax.random.split(key, 3)

    N, C, H, W = 2, 4, 16, 16
    x = jax.random.normal(kx, (N, C, H, W), dtype=jnp.float32)
    weight = jax.random.uniform(kw, (C,), jnp.float32, 0.5, 1.5)   # gamma
    bias = jax.random.uniform(kb, (C,), jnp.float32, -0.5, 0.5)    # beta
    running_mean = jnp.zeros((C,), jnp.float32)
    running_var = jnp.ones((C,), jnp.float32)
    eps, momentum = 1e-5, 0.1

    # Pure-JAX reference (training mode, biased batch variance for normalize).
    mean_r = jnp.mean(x, axis=(0, 2, 3))
    var_b = jnp.mean((x - mean_r.reshape(1, C, 1, 1)) ** 2, axis=(0, 2, 3))
    y_ref = ((x - mean_r.reshape(1, C, 1, 1))
             * lax.rsqrt(var_b.reshape(1, C, 1, 1) + eps)
             * weight.reshape(1, C, 1, 1) + bias.reshape(1, C, 1, 1))
    cnt = N * H * W
    var_u = var_b * cnt / (cnt - 1)
    rm_ref = (1 - momentum) * running_mean + momentum * mean_r
    rv_ref = (1 - momentum) * running_var + momentum * var_u

    # ---- Training mode (module default): fused single-call path ----
    train_fwd = jax.jit(functools.partial(meta_batch_norm2d, training=True,
                                          momentum=momentum, eps=eps))
    y, new_rm, new_rv = train_fwd(x, weight, bias, running_mean, running_var)
    y = jax.block_until_ready(y)
    assert y.shape == (N, C, H, W) and y.dtype == x.dtype
    assert jnp.allclose(y, y_ref, atol=1e-4, rtol=1e-4), \
        float(jnp.max(jnp.abs(y - y_ref)))
    assert jnp.allclose(new_rm, rm_ref, atol=1e-4, rtol=1e-4)
    assert jnp.allclose(new_rv, rv_ref, atol=1e-4, rtol=1e-4)

    # ---- Training mode: tiled two-pass path (large-activation code path) ----
    train_fwd_tiled = jax.jit(functools.partial(
        meta_batch_norm2d, training=True, momentum=momentum, eps=eps,
        force_tiled=True))
    y_t, rm_t, rv_t = train_fwd_tiled(x, weight, bias, running_mean, running_var)
    y_t = jax.block_until_ready(y_t)
    assert jnp.allclose(y_t, y_ref, atol=1e-4, rtol=1e-4)
    assert jnp.allclose(rm_t, rm_ref, atol=1e-4, rtol=1e-4)
    assert jnp.allclose(rv_t, rv_ref, atol=1e-4, rtol=1e-4)

    # ---- Eval mode (running-stats affine, tiled kernel) ----
    eval_fwd = jax.jit(functools.partial(meta_batch_norm2d, training=False,
                                         momentum=momentum, eps=eps))
    y_e, _, _ = eval_fwd(x, weight, bias, new_rm, new_rv)
    y_e = jax.block_until_ready(y_e)
    s_ref = weight * lax.rsqrt(new_rv + eps)
    y_e_ref = (x * s_ref.reshape(1, C, 1, 1)
               + (bias - new_rm * s_ref).reshape(1, C, 1, 1))
    assert jnp.allclose(y_e, y_e_ref, atol=1e-4, rtol=1e-4)

    print("KERNEL_OK")
</pallas_src>

<mosaic_0001>
module attributes {stable_mosaic.version = 11 : i64} {
  func.func @_bn_train_fused_kernel(%arg0: i32, %arg1: memref<8x256xf32, #tpu.memory_space<vmem>>, %arg2: memref<8x1xf32, #tpu.memory_space<vmem>>, %arg3: memref<8x1xf32, #tpu.memory_space<vmem>>, %arg4: memref<8x1xf32, #tpu.memory_space<vmem>>, %arg5: memref<8x1xf32, #tpu.memory_space<vmem>>, %arg6: memref<8x256xf32, #tpu.memory_space<vmem>>, %arg7: memref<8x1xf32, #tpu.memory_space<vmem>>, %arg8: memref<8x1xf32, #tpu.memory_space<vmem>>) attributes {dimension_semantics = [#tpu.dimension_semantics<arbitrary>], iteration_bounds = array<i64: 1>, scalar_prefetch = 0 : i64, scratch_operands = 0 : i64, tpu.core_type = #tpu.core_type<tc>, window_params = [{pipeline_mode = #tpu.pipeline_mode<synchronous>, transform_indices = @transform_0, window_bounds = array<i64: 8, 256>}, {pipeline_mode = #tpu.pipeline_mode<synchronous>, transform_indices = @transform_1, window_bounds = array<i64: 8, 1>}, {pipeline_mode = #tpu.pipeline_mode<synchronous>, transform_indices = @transform_2, window_bounds = array<i64: 8, 1>}, {pipeline_mode = #tpu.pipeline_mode<synchronous>, transform_indices = @transform_3, window_bounds = array<i64: 8, 1>}, {pipeline_mode = #tpu.pipeline_mode<synchronous>, transform_indices = @transform_4, window_bounds = array<i64: 8, 1>}, {pipeline_mode = #tpu.pipeline_mode<synchronous>, transform_indices = @transform_5, window_bounds = array<i64: 8, 256>}, {pipeline_mode = #tpu.pipeline_mode<synchronous>, transform_indices = @transform_6, window_bounds = array<i64: 8, 1>}, {pipeline_mode = #tpu.pipeline_mode<synchronous>, transform_indices = @transform_7, window_bounds = array<i64: 8, 1>}]} {
    %c0 = arith.constant 0 : index
    %c0_0 = arith.constant 0 : index
    %0 = vector.load %arg1[%c0, %c0_0] : memref<8x256xf32, #tpu.memory_space<vmem>>, vector<8x256xf32>
    %cst = arith.constant dense<0.000000e+00> : vector<8xf32>
    %1 = vector.multi_reduction <add>, %0, %cst [1] : vector<8x256xf32> to vector<8xf32>
    %2 = vector.shape_cast %1 : vector<8xf32> to vector<8x1xf32>
    %3 = arith.mulf %0, %0 : vector<8x256xf32>
    %cst_1 = arith.constant dense<0.000000e+00> : vector<8xf32>
    %4 = vector.multi_reduction <add>, %3, %cst_1 [1] : vector<8x256xf32> to vector<8xf32>
    %5 = vector.shape_cast %4 : vector<8xf32> to vector<8x1xf32>
    %c4_i32 = arith.constant 4 : i32
    %6 = tpu.dynamic_rotate %2 by %c4_i32 dim 0 : vector<8x1xf32>, i32 -> vector<8x1xf32>
    %7 = arith.addf %2, %6 : vector<8x1xf32>
    %c4_i32_2 = arith.constant 4 : i32
    %8 = tpu.dynamic_rotate %5 by %c4_i32_2 dim 0 : vector<8x1xf32>, i32 -> vector<8x1xf32>
    %9 = arith.addf %5, %8 : vector<8x1xf32>
    %cst_3 = arith.constant 0.001953125 : f32
    %10 = vector.broadcast %cst_3 : f32 to vector<8x1xf32>
    %11 = arith.mulf %7, %10 : vector<8x1xf32>
    %cst_4 = arith.constant 0.001953125 : f32
    %12 = vector.broadcast %cst_4 : f32 to vector<8x1xf32>
    %13 = arith.mulf %9, %12 : vector<8x1xf32>
    %14 = arith.mulf %11, %11 : vector<8x1xf32>
    %15 = arith.subf %13, %14 : vector<8x1xf32>
    %cst_5 = arith.constant 0.000000e+00 : f32
    %16 = vector.broadcast %cst_5 : f32 to vector<8x1xf32>
    %17 = arith.maximumf %15, %16 : vector<8x1xf32>
    %cst_6 = arith.constant 9.99999974E-6 : f32
    %18 = vector.broadcast %cst_6 : f32 to vector<8x1xf32>
    %19 = arith.addf %17, %18 : vector<8x1xf32>
    %20 = math.rsqrt %19 : vector<8x1xf32>
    %c0_7 = arith.constant 0 : index
    %c0_8 = arith.constant 0 : index
    %21 = vector.load %arg2[%c0_7, %c0_8] : memref<8x1xf32, #tpu.memory_space<vmem>>, vector<8x1xf32>
    %22 = arith.mulf %21, %20 : vector<8x1xf32>
    %c0_9 = arith.constant 0 : index
    %c0_10 = arith.constant 0 : index
    %23 = vector.load %arg3[%c0_9, %c0_10] : memref<8x1xf32, #tpu.memory_space<vmem>>, vector<8x1xf32>
    %24 = arith.mulf %11, %22 : vector<8x1xf32>
    %25 = arith.subf %23, %24 : vector<8x1xf32>
    %26 = vector.broadcast %22 : vector<8x1xf32> to vector<8x256xf32>
    %27 = arith.mulf %0, %26 : vector<8x256xf32>
    %28 = vector.broadcast %25 : vector<8x1xf32> to vector<8x256xf32>
    %29 = arith.addf %27, %28 : vector<8x256xf32>
    %c0_11 = arith.constant 0 : index
    %c0_12 = arith.constant 0 : index
    %30 = vector.load %arg6[%c0_11, %c0_12] : memref<8x256xf32, #tpu.memory_space<vmem>>, vector<8x256xf32>
    tpu.vector_store %arg6[%c0_11, %c0_12], %29 {strides = array<i32>} : memref<8x256xf32, #tpu.memory_space<vmem>>, vector<8x256xf32>,
    %cst_13 = arith.constant 1.00195694 : f32
    %31 = vector.broadcast %cst_13 : f32 to vector<8x1xf32>
    %32 = arith.mulf %17, %31 : vector<8x1xf32>
    %c0_14 = arith.constant 0 : index
    %c0_15 = arith.constant 0 : index
    %33 = vector.load %arg4[%c0_14, %c0_15] : memref<8x1xf32, #tpu.memory_space<vmem>>, vector<8x1xf32>
    %cst_16 = arith.constant 0.899999976 : f32
    %34 = vector.broadcast %cst_16 : f32 to vector<8x1xf32>
    %35 = arith.mulf %34, %33 : vector<8x1xf32>
    %cst_17 = arith.constant 1.000000e-01 : f32
    %36 = vector.broadcast %cst_17 : f32 to vector<8x1xf32>
    %37 = arith.mulf %36, %11 : vector<8x1xf32>
    %38 = arith.addf %35, %37 : vector<8x1xf32>
    %c0_18 = arith.constant 0 : index
    %c0_19 = arith.constant 0 : index
    %39 = vector.load %arg7[%c0_18, %c0_19] : memref<8x1xf32, #tpu.memory_space<vmem>>, vector<8x1xf32>
    tpu.vector_store %arg7[%c0_18, %c0_19], %38 {strides = array<i32>} : memref<8x1xf32, #tpu.memory_space<vmem>>, vector<8x1xf32>,
    %c0_20 = arith.constant 0 : index
    %c0_21 = arith.constant 0 : index
    %40 = vector.load %arg5[%c0_20, %c0_21] : memref<8x1xf32, #tpu.memory_space<vmem>>, vector<8x1xf32>
    %cst_22 = arith.constant 0.899999976 : f32
    %41 = vector.broadcast %cst_22 : f32 to vector<8x1xf32>
    %42 = arith.mulf %41, %40 : vector<8x1xf32>
    %cst_23 = arith.constant 1.000000e-01 : f32
    %43 = vector.broadcast %cst_23 : f32 to vector<8x1xf32>
    %44 = arith.mulf %43, %32 : vector<8x1xf32>
    %45 = arith.addf %42, %44 : vector<8x1xf32>
    %c0_24 = arith.constant 0 : index
    %c0_25 = arith.constant 0 : index
    %46 = vector.load %arg8[%c0_24, %c0_25] : memref<8x1xf32, #tpu.memory_space<vmem>>, vector<8x1xf32>
    tpu.vector_store %arg8[%c0_24, %c0_25], %45 {strides = array<i32>} : memref<8x1xf32, #tpu.memory_space<vmem>>, vector<8x1xf32>,
    return
  }
  func.func @transform_0(%arg0: i32) -> (i32, i32) {
    %c0_i32 = arith.constant 0 : i32
    %c0_i32_0 = arith.constant 0 : i32
    %c0_i32_1 = arith.constant 0 : i32
    return %c0_i32, %c0_i32_0 : i32, i32
  }
  func.func @transform_1(%arg0: i32) -> (i32, i32) {
    %c0_i32 = arith.constant 0 : i32
    %c0_i32_0 = arith.constant 0 : i32
    %c0_i32_1 = arith.constant 0 : i32
    return %c0_i32, %c0_i32_0 : i32, i32
  }
  func.func @transform_2(%arg0: i32) -> (i32, i32) {
    %c0_i32 = arith.constant 0 : i32
    %c0_i32_0 = arith.constant 0 : i32
    %c0_i32_1 = arith.constant 0 : i32
    return %c0_i32, %c0_i32_0 : i32, i32
  }
  func.func @transform_3(%arg0: i32) -> (i32, i32) {
    %c0_i32 = arith.constant 0 : i32
    %c0_i32_0 = arith.constant 0 : i32
    %c0_i32_1 = arith.constant 0 : i32
    return %c0_i32, %c0_i32_0 : i32, i32
  }
  func.func @transform_4(%arg0: i32) -> (i32, i32) {
    %c0_i32 = arith.constant 0 : i32
    %c0_i32_0 = arith.constant 0 : i32
    %c0_i32_1 = arith.constant 0 : i32
    return %c0_i32, %c0_i32_0 : i32, i32
  }
  func.func @transform_5(%arg0: i32) -> (i32, i32) {
    %c0_i32 = arith.constant 0 : i32
    %c0_i32_0 = arith.constant 0 : i32
    %c0_i32_1 = arith.constant 0 : i32
    return %c0_i32, %c0_i32_0 : i32, i32
  }
  func.func @transform_6(%arg0: i32) -> (i32, i32) {
    %c0_i32 = arith.constant 0 : i32
    %c0_i32_0 = arith.constant 0 : i32
    %c0_i32_1 = arith.constant 0 : i32
    return %c0_i32, %c0_i32_0 : i32, i32
  }
  func.func @transform_7(%arg0: i32) -> (i32, i32) {
    %c0_i32 = arith.constant 0 : i32
    %c0_i32_0 = arith.constant 0 : i32
    %c0_i32_1 = arith.constant 0 : i32
    return %c0_i32, %c0_i32_0 : i32, i32
  }
}

</mosaic_0001>

<llo_original>
// kernel: tile.18
$region0: #{tile.18}
  #allocation0 [shape = 's32[1]{0}', space=sflag, size = 0x4, scoped, tag = 'scoped memory for tile.18']
  %s0 = inlined_call_operand.vmem [shape: f32[4], index: 0, kind: input, shape index: {}]
  %s1 = inlined_call_operand.vmem [shape: f32[2,1,1,4], index: 1, kind: output, shape index: {}]
  // Predicated region
  $region2: #{tile.18} parent=0 // pred_check
    _
  $region3: #{tile.18} parent=0 // pred_check_branch
    %3 = sbr.rel (0) target = $region5
  $region4: #{tile.18} parent=0 // pred_region
    _
  $region5: #{tile.18} parent=0 // pred_fallthru
    _
  %v4 = vld [vmem:[%s0] ss:$0 sm:$0xff]
  %5 = vst [vmem:[%s1] sm:$0x3] %v4

// kernel: tile.3
$region0: #{tile.3}
  %s0 = inlined_call_operand.vmem [shape: f32[2,1,1,4], index: 0, kind: input, shape index: {}]
  %s1 = inlined_call_operand.vmem [shape: f32[8,1], index: 1, kind: output, shape index: {}]
  $region1: #{tile.3} parent=0
    #allocation0 [shape = 'u8[4096]{0}', space=vmem, size = 0x1000, scoped, tag = 'scoped mem for input reshape']
    %s3 = sshllo.u32 0, 2
    %v4 = vld [vmem:[%s0] sm:%s3]
    %5 = vst [vmem:[#allocation0] sm:%s3] %v4
    %v6 = vld [vmem:[#allocation0] sm:$0x3]
    %vm7 = vcmask 7168
    %8 = vst.msk [vmem:[%s1] ss:$4 sm:$0x3] %vm7, %v6
    %v9 = vld [vmem:[#allocation0] sm:$0x3]
    %10 = vrot.lane.b32.xlu0 %v9, 127
    %v11 = vpop.permute.xlu0 %10
    %vm12 = vcmask 7168
    %s13 = scalar_lea.vmem %s1, 1
    %14 = vst.msk [vmem:[%s13] ss:$4 sm:$0x3] %vm12, %v11
    %v15 = vld [vmem:[#allocation0] sm:$0x3]
    %16 = vrot.lane.b32.xlu0 %v15, 126
    %v17 = vpop.permute.xlu0 %16
    %vm18 = vcmask 7168
    %s19 = scalar_lea.vmem %s1, 2
    %20 = vst.msk [vmem:[%s19] ss:$4 sm:$0x3] %vm18, %v17
    %v21 = vld [vmem:[#allocation0] sm:$0x3]
    %22 = vrot.lane.b32.xlu0 %v21, 125
    %v23 = vpop.permute.xlu0 %22
    %vm24 = vcmask 7168
    %s25 = scalar_lea.vmem %s1, 3
    %26 = vst.msk [vmem:[%s25] ss:$4 sm:$0x3] %vm24, %v23

// kernel: meta_batch_norm2d.1
$region0: #{meta_batch_norm2d.1}
  #allocation0 [shape = 'u32[]', space=smem, size = 0x4, offset = 0x4, fixed_abs, tag = 'smem constant byte address 0x4 - core index']
  #allocation1 [shape = 'u32[144,128]{1,0:T(1,128)}', space=vmem, size = 0x12000, scoped, tag = 'internal scratch']
  %s0 = inlined_call_operand.vmem [shape: f32[8,256], index: 0, kind: input, shape index: {}]
  %s1 = inlined_call_operand.vmem [shape: f32[8,1], index: 1, kind: input, shape index: {}]
  %s2 = inlined_call_operand.vmem [shape: f32[8,1], index: 2, kind: input, shape index: {}]
  %s3 = inlined_call_operand.vmem [shape: f32[8,1], index: 3, kind: input, shape index: {}]
  %s4 = inlined_call_operand.vmem [shape: f32[8,1], index: 4, kind: input, shape index: {}]
  %s5 = inlined_call_operand.vmem [shape: f32[8,256], index: 5, kind: output, shape index: {0}]
  %s6 = inlined_call_operand.vmem [shape: f32[8,1], index: 6, kind: output, shape index: {1}]
  %s7 = inlined_call_operand.vmem [shape: f32[8,1], index: 7, kind: output, shape index: {2}]
  %8 = xla_tuple %s5, %s6, %s7
  %s9 = sld [smem:[#allocation0]]
  $region46: #{meta_batch_norm2d.1} parent=0
    _
  %s11 = ssub.s32 1, %s9
  %s12 = scalar_select 0, %s11, %s9
  // Predicated region
  $region2: #{meta_batch_norm2d.1} parent=0 // pred_check
    _
  $region3: #{meta_batch_norm2d.1} parent=0 // pred_check_branch
    %14 = sbr.rel (0) target = $region5
  $region4: #{meta_batch_norm2d.1} parent=0 // pred_region
    _
  $region5: #{meta_batch_norm2d.1} parent=0 // pred_fallthru
    _
  // Predicated region
  $region6: #{meta_batch_norm2d.1} parent=0 // pred_check
    _
  $region7: #{meta_batch_norm2d.1} parent=0 // pred_check_branch
    %16 = sbr.rel (0) target = $region9
  $region8: #{meta_batch_norm2d.1} parent=0 // pred_region
    _
  $region9: #{meta_batch_norm2d.1} parent=0 // pred_fallthru
    _
  // Predicated region
  $region10: #{meta_batch_norm2d.1} parent=0 // pred_check
    _
  $region11: #{meta_batch_norm2d.1} parent=0 // pred_check_branch
    %18 = sbr.rel (0) target = $region13
  $region12: #{meta_batch_norm2d.1} parent=0 // pred_region
    _
  $region13: #{meta_batch_norm2d.1} parent=0 // pred_fallthru
    _
  // Predicated region
  $region14: #{meta_batch_norm2d.1} parent=0 // pred_check
    _
  $region15: #{meta_batch_norm2d.1} parent=0 // pred_check_branch
    %20 = sbr.rel (0) target = $region17
  $region16: #{meta_batch_norm2d.1} parent=0 // pred_region
    _
  $region17: #{meta_batch_norm2d.1} parent=0 // pred_fallthru
    _
  // Predicated region
  $region18: #{meta_batch_norm2d.1} parent=0 // pred_check
    _
  $region19: #{meta_batch_norm2d.1} parent=0 // pred_check_branch
    %22 = sbr.rel (0) target = $region21
  $region20: #{meta_batch_norm2d.1} parent=0 // pred_region
    _
  $region21: #{meta_batch_norm2d.1} parent=0 // pred_fallthru
    _
  %v23 = vld [vmem:[%s0] sm:$0xff]
  %v24 = vld [vmem:[%s0 + $0x8] sm:$0xff]
  %v25 = vadd.f32 %v23, %v24
  %26 = vadd.xlane.f32.xlu0 %v25
  %v27 = vpop.xlane.xlu0 %26
  %v28 = vmul.f32 %v23, %v23
  %v29 = vmul.f32 %v24, %v24
  %v30 = vadd.f32 %v28, %v29
  %31 = vadd.xlane.f32.xlu0 %v30
  %v32 = vpop.xlane.xlu0 %31
  %v33 = vrot.slane %v27, 4
  %v34 = vadd.f32 %v27, %v33
  %v35 = vrot.slane %v32, 4
  %v36 = vadd.f32 %v32, %v35
  %v37 = vmul.f32 %v34, 0.001953125
  %v38 = vmul.f32 %v36, 0.001953125
  %v39 = vmul.f32 %v37, %v37
  %v40 = vsub.f32 %v38, %v39
  %v41 = vmax.f32 %v40, 0.0
  %v42 = vadd.f32 %v41, 1e-05
  %v43 = vrsqrt.pop %v42
  %v44 = vld [vmem:[%s1] sm:$0xff]
  %v45 = vmul.f32 %v44, %v43
  %v46 = vld [vmem:[%s2] sm:$0xff]
  %v47 = vmul.f32 %v37, %v45
  %v48 = vsub.f32 %v46, %v47
  %50 = vset.pattern.permute.xlu0 0
  %51 = vperm.xlu0 %50, %v45
  %v52 = vpop.permute.xlu0 %51
  %v54 = vmul.f32 %v23, %v52
  %v55 = vmul.f32 %v24, %v52
  %57 = vset.pattern.permute.xlu0 0
  %58 = vperm.xlu0 %57, %v48
  %v59 = vpop.permute.xlu0 %58
  %v61 = vadd.f32 %v54, %v59
  %v62 = vadd.f32 %v55, %v59
  %63 = vst [vmem:[%s5] sm:$0xff] %v61
  %64 = vst [vmem:[%s5 + $0x8] sm:$0xff] %v62
  %v65 = vmul.f32 %v41, 1.0019569
  %v66 = vld [vmem:[%s3] sm:$0xff]
  %v67 = vmul.f32 %v66, 0.9
  %v68 = vmul.f32 %v37, 0.1
  %v69 = vadd.f32 %v67, %v68
  %vm70 = vcmask 7168
  %71 = vst.msk [vmem:[%s6] sm:$0xff] %vm70, %v69
  %v72 = vld [vmem:[%s4] sm:$0xff]
  %v73 = vmul.f32 %v72, 0.9
  %v74 = vmul.f32 %v65, 0.1
  %v75 = vadd.f32 %v73, %v74
  %76 = vst.msk [vmem:[%s7] sm:$0xff] %vm70, %v75
  // Predicated region
  $region22: #{meta_batch_norm2d.1} parent=0 // pred_check
    _
  $region23: #{meta_batch_norm2d.1} parent=0 // pred_check_branch
    %78 = sbr.rel (0) target = $region25
  $region24: #{meta_batch_norm2d.1} parent=0 // pred_region
    _
  $region25: #{meta_batch_norm2d.1} parent=0 // pred_fallthru
    _
  // Predicated region
  $region26: #{meta_batch_norm2d.1} parent=0 // pred_check
    _
  $region27: #{meta_batch_norm2d.1} parent=0 // pred_check_branch
    %80 = sbr.rel (0) target = $region29
  $region28: #{meta_batch_norm2d.1} parent=0 // pred_region
    _
  $region29: #{meta_batch_norm2d.1} parent=0 // pred_fallthru
    _
  // Predicated region
  $region30: #{meta_batch_norm2d.1} parent=0 // pred_check
    _
  $region31: #{meta_batch_norm2d.1} parent=0 // pred_check_branch
    %82 = sbr.rel (0) target = $region33
  $region32: #{meta_batch_norm2d.1} parent=0 // pred_region
    _
  $region33: #{meta_batch_norm2d.1} parent=0 // pred_fallthru
    _
  // Predicated region
  $region34: #{meta_batch_norm2d.1} parent=0 // pred_check
    _
  $region35: #{meta_batch_norm2d.1} parent=0 // pred_check_branch
    %84 = sbr.rel (0) target = $region37
  $region36: #{meta_batch_norm2d.1} parent=0 // pred_region
    _
  $region37: #{meta_batch_norm2d.1} parent=0 // pred_fallthru
    _
  // Predicated region
  $region38: #{meta_batch_norm2d.1} parent=0 // pred_check
    _
  $region39: #{meta_batch_norm2d.1} parent=0 // pred_check_branch
    %86 = sbr.rel (0) target = $region41
  $region40: #{meta_batch_norm2d.1} parent=0 // pred_region
    _
  $region41: #{meta_batch_norm2d.1} parent=0 // pred_fallthru
    _
  // Predicated region
  $region42: #{meta_batch_norm2d.1} parent=0 // pred_check
    _
  $region43: #{meta_batch_norm2d.1} parent=0 // pred_check_branch
    %88 = sbr.rel (0) target = $region45
  $region44: #{meta_batch_norm2d.1} parent=0 // pred_region
    _
  $region45: #{meta_batch_norm2d.1} parent=0 // pred_fallthru
    _

</llo_original>
